<compile_context>
chip_gen: v5e
topology: v5e:2x2
jax: 0.10.0
libtpu: 0.0.40
codegen_flags: <defaults>
</compile_context>

<pallas_src>
import jax
import jax.numpy as jnp
from jax import lax
from jax.experimental import pallas as pl
from jax.experimental.pallas import tpu as pltpu

EPS = 1e-5  # nn.LayerNorm default


def _ln_channels_kernel(x_ref, w_ref, b_ref, o_ref):
    # x_ref: (NB, C, S, L).  Reduction axis (C) is non-minor -> VPU-only.
    x = x_ref[...].astype(jnp.float32)
    inv_c = jnp.float32(1.0 / x.shape[1])
    # One-pass stats: avoid a live block-sized `centered` temporary.
    s1 = jnp.sum(x, axis=1, keepdims=True)            # (NB, 1, S, L)
    s2 = jnp.sum(x * x, axis=1, keepdims=True)
    mean = s1 * inv_c
    var = jnp.maximum(s2 * inv_c - mean * mean, 0.0)   # biased var, clamp fp noise
    inv = lax.rsqrt(var + EPS)                         # EUP rsqrt (free slot)
    w = w_ref[...].astype(jnp.float32)                 # (1, C, 1, 1)
    b = b_ref[...].astype(jnp.float32)
    o_ref[...] = ((x - mean) * inv * w + b).astype(o_ref.dtype)


def _largest_divisor_leq(n, cap):
    cap = max(1, min(n, cap))
    for d in range(cap, 0, -1):
        if n % d == 0:
            return d
    return 1


def _pick_spatial_tiles(hw_pad, c, itemsize, target_bytes):
    """Choose (L, R, S): lane width L (multiple of 128), R = hw_pad // L rows,
    and S rows per block with S a multiple of 8 or S == R (BlockSpec legality)."""
    fallback = None
    for L in (2048, 1024, 512, 256, 128):
        if hw_pad % L:
            continue
        R = hw_pad // L
        row_bytes = c * L * itemsize
        s_cap = max(1, target_bytes // row_bytes)
        if R <= s_cap:
            return L, R, R                 # whole image's rows fit one block
        s = (min(s_cap, R) // 8) * 8       # S must be a multiple of 8
        while s >= 8:
            if R % s == 0:
                return L, R, s
            s -= 8
        blk = R * row_bytes                # no 8-aligned split fits the budget:
        if fallback is None or blk < fallback[3]:
            fallback = (L, R, R, blk)      # remember smallest full-R block
    if fallback is not None:
        return fallback[0], fallback[1], fallback[2]
    return hw_pad, 1, 1                    # unreachable after 128-padding


def layer_norm_channels(x, weight, bias, *, target_block_bytes=4 * 1024 * 1024):
    """x: (N, C, H, W).  weight, bias: (C,).  Returns (N, C, H, W)."""
    N, C, H, W = x.shape
    HW = H * W
    itemsize = jnp.dtype(x.dtype).itemsize

    # Pad the flattened spatial axis to a multiple of 128 so every output
    # store is a full-width lane-dense vst.  Padding only adds spatial
    # columns; the channel reduction is unaffected and the tail is sliced off.
    hw_pad = ((HW + 127) // 128) * 128

    L, R, S = _pick_spatial_tiles(hw_pad, C, itemsize, target_block_bytes)

    # Batch whole images per block for tiny problems, but keep >= 2 grid
    # steps when N > 1 so megacore / v7x's two TensorCores both get work.
    NB = 1
    if S == R:
        block_bytes = C * R * L * itemsize
        nb_cap = max(1, target_block_bytes // block_bytes)
        if N > 1:
            nb_cap = min(nb_cap, max(1, N // 2))
        NB = _largest_divisor_leq(N, nb_cap)

    grid = (N // NB, R // S)

    x_flat = x.reshape(N, C, HW)
    if hw_pad != HW:
        x_flat = jnp.pad(x_flat, ((0, 0), (0, 0), (0, hw_pad - HW)))
    xr = x_flat.reshape(N, C, R, L)
    w4 = weight.reshape(1, C, 1, 1)
    b4 = bias.reshape(1, C, 1, 1)

    out = pl.pallas_call(
        _ln_channels_kernel,
        out_shape=jax.ShapeDtypeStruct((N, C, R, L), x.dtype),
        grid_spec=pltpu.PrefetchScalarGridSpec(
            num_scalar_prefetch=0,
            grid=grid,
            in_specs=[
                pl.BlockSpec((NB, C, S, L), lambda i, j: (i, 0, j, 0)),
                # constant index_map -> fetched once, resident across the grid
                pl.BlockSpec((1, C, 1, 1), lambda i, j: (0, 0, 0, 0)),
                pl.BlockSpec((1, C, 1, 1), lambda i, j: (0, 0, 0, 0)),
            ],
            out_specs=pl.BlockSpec((NB, C, S, L), lambda i, j: (i, 0, j, 0)),
        ),
        compiler_params=pltpu.CompilerParams(
            dimension_semantics=("parallel", "parallel"),
            vmem_limit_bytes=48 * 1024 * 1024,
        ),
        cost_estimate=pl.CostEstimate(
            flops=8 * N * C * hw_pad,
            transcendentals=N * hw_pad,
            bytes_accessed=2 * N * C * hw_pad * itemsize + 2 * C * itemsize,
        ),
    )(xr, w4, b4)

    out = out.reshape(N, C, hw_pad)[:, :, :HW].reshape(N, C, H, W)
    return out


def _reference(x, weight, bias):
    # pure-JAX reference mirroring the PyTorch forward
    xt = jnp.transpose(x, (0, 2, 3, 1))  # NHWC
    mean = jnp.mean(xt, axis=-1, keepdims=True)
    var = jnp.mean((xt - mean) ** 2, axis=-1, keepdims=True)
    xn = (xt - mean) / jnp.sqrt(var + EPS)
    y = xn * weight + bias
    return jnp.transpose(y, (0, 3, 1, 2))  # back to NCHW


if __name__ == "__main__":
    key = jax.random.PRNGKey(0)
    kx, kw, kb = jax.random.split(key, 3)

    N, C, H, W = 2, 4, 16, 16
    x = jax.random.normal(kx, (N, C, H, W), dtype=jnp.float32)
    # nn.LayerNorm default init is weight=1, bias=0; use deterministic random
    # values instead so the affine path is actually exercised.
    weight = 1.0 + 0.1 * jax.random.normal(kw, (C,), dtype=jnp.float32)
    bias = 0.1 * jax.random.normal(kb, (C,), dtype=jnp.float32)

    out = jax.block_until_ready(layer_norm_channels(x, weight, bias))
    ref = _reference(x, weight, bias)

    assert out.shape == (N, C, H, W)
    assert jnp.allclose(out, ref, atol=1e-5, rtol=1e-5)

    print("KERNEL_OK")
</pallas_src>

<mosaic_0001>
module attributes {stable_mosaic.version = 11 : i64} {
  func.func @_ln_channels_kernel(%arg0: i32, %arg1: i32, %arg2: memref<1x4x1x256xf32, #tpu.memory_space<vmem>>, %arg3: memref<1x4x1x1xf32, #tpu.memory_space<vmem>>, %arg4: memref<1x4x1x1xf32, #tpu.memory_space<vmem>>, %arg5: memref<1x4x1x256xf32, #tpu.memory_space<vmem>>) attributes {dimension_semantics = [#tpu.dimension_semantics<parallel>, #tpu.dimension_semantics<parallel>], iteration_bounds = array<i64: 2, 1>, scalar_prefetch = 0 : i64, scratch_operands = 0 : i64, tpu.core_type = #tpu.core_type<tc>, window_params = [{transform_indices = @transform_0, window_bounds = array<i64: 1, 4, 1, 256>}, {pipeline_mode = #tpu.pipeline_mode<synchronous>, transform_indices = @transform_1, window_bounds = array<i64: 1, 4, 1, 1>}, {pipeline_mode = #tpu.pipeline_mode<synchronous>, transform_indices = @transform_2, window_bounds = array<i64: 1, 4, 1, 1>}, {transform_indices = @transform_3, window_bounds = array<i64: 1, 4, 1, 256>}]} {
    %c0 = arith.constant 0 : index
    %c0_0 = arith.constant 0 : index
    %c0_1 = arith.constant 0 : index
    %c0_2 = arith.constant 0 : index
    %0 = vector.load %arg2[%c0, %c0_0, %c0_1, %c0_2] : memref<1x4x1x256xf32, #tpu.memory_space<vmem>>, vector<1x4x1x256xf32>
    %cst = arith.constant dense<0.000000e+00> : vector<1x1x256xf32>
    %1 = vector.multi_reduction <add>, %0, %cst [1] : vector<1x4x1x256xf32> to vector<1x1x256xf32>
    %2 = vector.shape_cast %1 : vector<1x1x256xf32> to vector<1x1x1x256xf32>
    %3 = arith.mulf %0, %0 : vector<1x4x1x256xf32>
    %cst_3 = arith.constant dense<0.000000e+00> : vector<1x1x256xf32>
    %4 = vector.multi_reduction <add>, %3, %cst_3 [1] : vector<1x4x1x256xf32> to vector<1x1x256xf32>
    %5 = vector.shape_cast %4 : vector<1x1x256xf32> to vector<1x1x1x256xf32>
    %cst_4 = arith.constant 2.500000e-01 : f32
    %6 = vector.broadcast %cst_4 : f32 to vector<1x1x1x256xf32>
    %7 = arith.mulf %2, %6 : vector<1x1x1x256xf32>
    %cst_5 = arith.constant 2.500000e-01 : f32
    %8 = vector.broadcast %cst_5 : f32 to vector<1x1x1x256xf32>
    %9 = arith.mulf %5, %8 : vector<1x1x1x256xf32>
    %10 = arith.mulf %7, %7 : vector<1x1x1x256xf32>
    %11 = arith.subf %9, %10 : vector<1x1x1x256xf32>
    %cst_6 = arith.constant 0.000000e+00 : f32
    %12 = vector.broadcast %cst_6 : f32 to vector<1x1x1x256xf32>
    %13 = arith.maximumf %11, %12 : vector<1x1x1x256xf32>
    %cst_7 = arith.constant 9.99999974E-6 : f32
    %14 = vector.broadcast %cst_7 : f32 to vector<1x1x1x256xf32>
    %15 = arith.addf %13, %14 : vector<1x1x1x256xf32>
    %16 = math.rsqrt %15 : vector<1x1x1x256xf32>
    %c0_8 = arith.constant 0 : index
    %c0_9 = arith.constant 0 : index
    %c0_10 = arith.constant 0 : index
    %c0_11 = arith.constant 0 : index
    %17 = vector.load %arg3[%c0_8, %c0_9, %c0_10, %c0_11] : memref<1x4x1x1xf32, #tpu.memory_space<vmem>>, vector<1x4x1x1xf32>
    %c0_12 = arith.constant 0 : index
    %c0_13 = arith.constant 0 : index
    %c0_14 = arith.constant 0 : index
    %c0_15 = arith.constant 0 : index
    %18 = vector.load %arg4[%c0_12, %c0_13, %c0_14, %c0_15] : memref<1x4x1x1xf32, #tpu.memory_space<vmem>>, vector<1x4x1x1xf32>
    %19 = vector.broadcast %7 : vector<1x1x1x256xf32> to vector<1x4x1x256xf32>
    %20 = arith.subf %0, %19 : vector<1x4x1x256xf32>
    %21 = vector.broadcast %16 : vector<1x1x1x256xf32> to vector<1x4x1x256xf32>
    %22 = arith.mulf %20, %21 : vector<1x4x1x256xf32>
    %23 = vector.broadcast %17 : vector<1x4x1x1xf32> to vector<1x4x1x256xf32>
    %24 = arith.mulf %22, %23 : vector<1x4x1x256xf32>
    %25 = vector.broadcast %18 : vector<1x4x1x1xf32> to vector<1x4x1x256xf32>
    %26 = arith.addf %24, %25 : vector<1x4x1x256xf32>
    %c0_16 = arith.constant 0 : index
    %c0_17 = arith.constant 0 : index
    %c0_18 = arith.constant 0 : index
    %c0_19 = arith.constant 0 : index
    %27 = vector.load %arg5[%c0_16, %c0_17, %c0_18, %c0_19] : memref<1x4x1x256xf32, #tpu.memory_space<vmem>>, vector<1x4x1x256xf32>
    tpu.vector_store %arg5[%c0_16, %c0_17, %c0_18, %c0_19], %26 {strides = array<i32>} : memref<1x4x1x256xf32, #tpu.memory_space<vmem>>, vector<1x4x1x256xf32>,
    return
  }
  func.func @transform_0(%arg0: i32, %arg1: i32) -> (i32, i32, i32, i32) {
    %c0_i32 = arith.constant 0 : i32
    %c0_i32_0 = arith.constant 0 : i32
    %c0_i32_1 = arith.constant 0 : i32
    return %arg0, %c0_i32, %arg1, %c0_i32_0 : i32, i32, i32, i32
  }
  func.func @transform_1(%arg0: i32, %arg1: i32) -> (i32, i32, i32, i32) {
    %c0_i32 = arith.constant 0 : i32
    %c0_i32_0 = arith.constant 0 : i32
    %c0_i32_1 = arith.constant 0 : i32
    %c0_i32_2 = arith.constant 0 : i32
    %c0_i32_3 = arith.constant 0 : i32
    return %c0_i32, %c0_i32_0, %c0_i32_1, %c0_i32_2 : i32, i32, i32, i32
  }
  func.func @transform_2(%arg0: i32, %arg1: i32) -> (i32, i32, i32, i32) {
    %c0_i32 = arith.constant 0 : i32
    %c0_i32_0 = arith.constant 0 : i32
    %c0_i32_1 = arith.constant 0 : i32
    %c0_i32_2 = arith.constant 0 : i32
    %c0_i32_3 = arith.constant 0 : i32
    return %c0_i32, %c0_i32_0, %c0_i32_1, %c0_i32_2 : i32, i32, i32, i32
  }
  func.func @transform_3(%arg0: i32, %arg1: i32) -> (i32, i32, i32, i32) {
    %c0_i32 = arith.constant 0 : i32
    %c0_i32_0 = arith.constant 0 : i32
    %c0_i32_1 = arith.constant 0 : i32
    return %arg0, %c0_i32, %arg1, %c0_i32_0 : i32, i32, i32, i32
  }
}

</mosaic_0001>

<llo_original>
// kernel: tpu_custom_call.1
$region0: #{tpu_custom_call.1}
  #allocation0 [shape = 'u32[]', space=smem, size = 0x4, offset = 0x4, fixed_abs, tag = 'smem constant byte address 0x4 - core index']
  #allocation1 [shape = 'u32[72,128]{1,0:T(1,128)}', space=vmem, size = 0x9000, scoped, tag = 'internal scratch']
  %s0 = inlined_call_operand.hbm [shape: f32[2,4,1,256], index: 0, kind: input, shape index: {}]
  %s1 = inlined_call_operand.vmem [shape: f32[1,4,1,1], index: 1, kind: input, shape index: {}]
  %s2 = inlined_call_operand.vmem [shape: f32[1,4,1,1], index: 2, kind: input, shape index: {}]
  %s3 = inlined_call_operand.hbm [shape: f32[2,4,1,256], index: 3, kind: output, shape index: {}]
  %s4 = sld [smem:[#allocation0]]
  $region49: #{tpu_custom_call.1} parent=0
    _
  %s6 = ssub.s32 1, %s4
  %s7 = scalar_select 0, %s6, %s4
  $region1: #{tpu_custom_call.1} parent=0
    #allocation2 [shape = 'u8[8192]{0}', space=vmem, size = 0x2000, scoped, tag = 'input window, operand 0']
    #allocation3 [shape = 's32[2]{0}', space=sflag, size = 0x8, scoped, tag = 'scoped memory for tpu_custom_call.1']
    #allocation4 [shape = 's32[2]{0}', space=sflag, size = 0x8, scoped, tag = 'scoped memory for tpu_custom_call.1']
    #allocation5 [shape = 'u8[8192]{0}', space=vmem, size = 0x2000, scoped, tag = 'output window, operand 0']
    %8 = vsyncpa [#allocation3], 0
    %s9 = scalar_lea.sflag [#allocation3], 1
    %10 = vsyncpa %s9, 0
    %11 = vsyncpa [#allocation4], 0
    %s12 = scalar_lea.sflag [#allocation4], 1
    %13 = vsyncpa %s12, 0
    loop: start=0, step=1, limit=4
    $region2: #{tpu_custom_call.1} parent=1 // loop_pre_header
      _
    $region3: #{tpu_custom_call.1} parent=1 // loop_header
      %s15 = sphi 0, %s19
      %p16 = scmp.ge.s32.totalorder %s15, 4
      %s22 = sphi 0, %s34
      %s23 = sphi 0, %s30
      %s24 = sphi 0, %s22
      %s25 = sphi 0, %s23
      %s26 = sphi 0, %s24
      %s27 = sphi 0, %s25
      %s39 = sphi 0, %s41
      %s42 = sphi 0, %s39
      %s43 = sphi 0, %s42
      %s59 = sphi 0, %s43
      %s63 = sphi 0, %s63
      %s65 = sphi 0, %s63
      %s66 = sphi 0, %s65
      %s80 = sphi 0, %s66
      %s84 = sphi 0, %s84
      %s86 = sphi 0, %s84
      %s87 = sphi 0, %s86
      %s101 = sphi 0, %s87
      %s109 = sphi 0, %s111
      %s112 = sphi 0, %s109
      %s113 = sphi 0, %s112
      %s129 = sphi 0, %s113
    $region4: #{tpu_custom_call.1} parent=1 // loop_header_branch
      %18 = sbr.rel (%p16) target = $region8
    $region5: #{tpu_custom_call.1} parent=1 // loop_body
      %s20 = ssub.s32 %s15, 1
      %s21 = ssub.s32 %s15, 2
      %s28 = sadd.s32 1, %s23
      %p29 = scmp.ge.s32.totalorder %s28, 1
      %s30 = scalar_select %p29, 0, %s28
      %s31 = sadd.s32 1, %s22
      %s32 = scalar_select %p29, %s31, %s22
      %p33 = scmp.ge.s32.totalorder %s32, 2
      %s34 = scalar_select %p33, 0, %s32
      %s35 = ssub.s32 %s22, %s34
      %s36 = ssub.s32 %s23, %s30
      %s37 = sor.u32 %s35, %s36
      %p38 = scmp.eq.s32.totalorder %s37, 0
      %s40 = sadd.s32 %s39, 1
      %s41 = scalar_select %p38, %s39, %s40
      %p44 = pneg %p38
      %p45 = scmp.eq.s32.totalorder %s15, 1
      %p46 = por %p44, %p45
      %p47 = scmp.ne.s32.totalorder %s39, %s42
      %p48 = scmp.eq.s32.totalorder %s15, 0
      %p49 = por %p47, %p48
      %p50 = scmp.ne.s32.totalorder %s39, %s42
      %p51 = scmp.eq.s32.totalorder %s20, 1
      %p52 = por %p50, %p51
      %p53 = scmp.ne.s32.totalorder %s42, %s43
      %p54 = scmp.eq.s32.totalorder %s20, 0
      %p55 = por %p53, %p54
      %p56 = scmp.ne.s32.totalorder %s42, %s43
      %p57 = scmp.eq.s32.totalorder %s21, 1
      %p58 = por %p56, %p57
      %p60 = scmp.ne.s32.totalorder %s43, %s59
      %p61 = scmp.eq.s32.totalorder %s21, 0
      %p62 = por %p60, %p61
      %s64 = sadd.s32 %s63, 1
      %p67 = scmp.eq.s32.totalorder %s15, 1
      %p68 = scmp.ne.s32.totalorder %s63, %s65
      %p69 = scmp.eq.s32.totalorder %s15, 0
      %p70 = por %p68, %p69
      %p71 = scmp.ne.s32.totalorder %s63, %s65
      %p72 = scmp.eq.s32.totalorder %s20, 1
      %p73 = por %p71, %p72
      %p74 = scmp.ne.s32.totalorder %s65, %s66
      %p75 = scmp.eq.s32.totalorder %s20, 0
      %p76 = por %p74, %p75
      %p77 = scmp.ne.s32.totalorder %s65, %s66
      %p78 = scmp.eq.s32.totalorder %s21, 1
      %p79 = por %p77, %p78
      %p81 = scmp.ne.s32.totalorder %s66, %s80
      %p82 = scmp.eq.s32.totalorder %s21, 0
      %p83 = por %p81, %p82
      %s85 = sadd.s32 %s84, 1
      %p88 = scmp.eq.s32.totalorder %s15, 1
      %p89 = scmp.ne.s32.totalorder %s84, %s86
      %p90 = scmp.eq.s32.totalorder %s15, 0
      %p91 = por %p89, %p90
      %p92 = scmp.ne.s32.totalorder %s84, %s86
      %p93 = scmp.eq.s32.totalorder %s20, 1
      %p94 = por %p92, %p93
      %p95 = scmp.ne.s32.totalorder %s86, %s87
      %p96 = scmp.eq.s32.totalorder %s20, 0
      %p97 = por %p95, %p96
      %p98 = scmp.ne.s32.totalorder %s86, %s87
      %p99 = scmp.eq.s32.totalorder %s21, 1
      %p100 = por %p98, %p99
      %p102 = scmp.ne.s32.totalorder %s87, %s101
      %p103 = scmp.eq.s32.totalorder %s21, 0
      %p104 = por %p102, %p103
      %s105 = ssub.s32 %s22, %s34
      %s106 = ssub.s32 %s23, %s30
      %s107 = sor.u32 %s105, %s106
      %p108 = scmp.eq.s32.totalorder %s107, 0
      %s110 = sadd.s32 %s109, 1
      %s111 = scalar_select %p108, %s109, %s110
      %p114 = pneg %p108
      %p115 = scmp.eq.s32.totalorder %s15, 1
      %p116 = por %p114, %p115
      %p117 = scmp.ne.s32.totalorder %s109, %s112
      %p118 = scmp.eq.s32.totalorder %s15, 0
      %p119 = por %p117, %p118
      %p120 = scmp.ne.s32.totalorder %s109, %s112
      %p121 = scmp.eq.s32.totalorder %s20, 1
      %p122 = por %p120, %p121
      %p123 = scmp.ne.s32.totalorder %s112, %s113
      %p124 = scmp.eq.s32.totalorder %s20, 0
      %p125 = por %p123, %p124
      %p126 = scmp.ne.s32.totalorder %s112, %s113
      %p127 = scmp.eq.s32.totalorder %s21, 1
      %p128 = por %p126, %p127
      %p130 = scmp.ne.s32.totalorder %s113, %s129
      %p131 = scmp.eq.s32.totalorder %s21, 0
      %p132 = por %p130, %p131
      %p133 = scmp.le.s32.totalorder 1, %s15
      %p134 = scmp.lt.s32.totalorder %s15, 3
      %p135 = pnand %p133, %p134
      %p136 = pneg %p135
      // Predicated region
      $region9: #{tpu_custom_call.1} parent=5 // pred_check
        _
      $region10: #{tpu_custom_call.1} parent=5 // pred_check_branch
        %138 = sbr.rel (%p135) target = $region12
      $region11: #{tpu_custom_call.1} parent=5 // pred_region
        %s139 = ssub.s32 %s15, 1
        // Predicated region
        $region13: #{tpu_custom_call.1} parent=11 // pred_check
          %p140 = pneg %p76
        $region14: #{tpu_custom_call.1} parent=11 // pred_check_branch
          %142 = sbr.rel (%p140) target = $region16
        $region15: #{tpu_custom_call.1} parent=11 // pred_region
          _
        $region16: #{tpu_custom_call.1} parent=11 // pred_fallthru
          _
        // Predicated region
        $region17: #{tpu_custom_call.1} parent=11 // pred_check
          %p143 = pneg %p97
        $region18: #{tpu_custom_call.1} parent=11 // pred_check_branch
          %145 = sbr.rel (%p143) target = $region20
        $region19: #{tpu_custom_call.1} parent=11 // pred_region
          _
        $region20: #{tpu_custom_call.1} parent=11 // pred_fallthru
          _
      $region12: #{tpu_custom_call.1} parent=5 // pred_fallthru
        _
      %p146 = scmp.lt.s32.totalorder %s15, 2
      // Predicated region
      $region21: #{tpu_custom_call.1} parent=5 // pred_check
        %p147 = pneg %p146
      $region22: #{tpu_custom_call.1} parent=5 // pred_check_branch
        %149 = sbr.rel (%p147) target = $region24
      $region23: #{tpu_custom_call.1} parent=5 // pred_region
        // Predicated region
        $region25: #{tpu_custom_call.1} parent=23 // pred_check
          %p150 = pneg %p49
        $region26: #{tpu_custom_call.1} parent=23 // pred_check_branch
          %152 = sbr.rel (%p150) target = $region28
        $region27: #{tpu_custom_call.1} parent=23 // pred_region
          %s153 = sand.u32 %s39, 1
          %s154 = scalar_lea.sflag [#allocation3], %s153
          %s155 = sand.u32 %s39, 1
          %s156 = smul.addr %s155, 8
          %s157 = scalar_lea.vmem [#allocation2], %s156
          %159 = vsyncadd %s154, 0
          %s160 = smul.addr %s23, 2
          %s161 = smul.addr %s22, 8
          %s162 = sadd.s32 %s160, %s161
          %s163 = scalar_lea.hbm %s0, %s162
          %s164 = sshll.u32 %s163, 4
          %s165 = int_to_ptr.hbm [resolvable:$true] %s164
          %s166 = sshll.u32 %s157, 4
          %s167 = int_to_ptr.vmem [resolvable:$true] %s166
          %172 = dma.hbm_to_vmem [thread:$0]  %s165, 128, %s167, %s154, 32, 32, 2
        $region28: #{tpu_custom_call.1} parent=23 // pred_fallthru
          _
      $region24: #{tpu_custom_call.1} parent=5 // pred_fallthru
        _
      %p173 = scmp.le.s32.totalorder 1, %s15
      %p174 = scmp.lt.s32.totalorder %s15, 3
      %p175 = pnand %p173, %p174
      %p176 = pneg %p175
      // Predicated region
      $region29: #{tpu_custom_call.1} parent=5 // pred_check
        _
      $region30: #{tpu_custom_call.1} parent=5 // pred_check_branch
        %178 = sbr.rel (%p175) target = $region32
      $region31: #{tpu_custom_call.1} parent=5 // pred_region
        %s179 = ssub.s32 %s15, 1
        %s180 = sand.u32 %s42, 1
        %s181 = scalar_lea.sflag [#allocation3], %s180
        %s182 = sand.u32 %s42, 1
        %s183 = smul.addr %s182, 8
        %s184 = scalar_lea.vmem [#allocation2], %s183
        // Predicated region
        $region33: #{tpu_custom_call.1} parent=31 // pred_check
          %p185 = pneg %p55
        $region34: #{tpu_custom_call.1} parent=31 // pred_check_branch
          %187 = sbr.rel (%p185) target = $region36
        $region35: #{tpu_custom_call.1} parent=31 // pred_region
          %189 = dma.done %s181, 128
        $region36: #{tpu_custom_call.1} parent=31 // pred_fallthru
          _
        %s190 = sand.u32 %s42, 1
        %s191 = scalar_lea.sflag [#allocation3], %s190
        %s192 = sand.u32 %s42, 1
        %s193 = smul.addr %s192, 8
        %s194 = scalar_lea.vmem [#allocation2], %s193
        %p195 = pneg %p55
        %p196 = pneg %p52
        %p197 = pneg %p76
        %p198 = pneg %p73
        %p199 = pneg %p97
        %p200 = pneg %p94
        %p201 = pneg %p125
        %p202 = pneg %p122
        %s203 = sand.u32 %s112, 1
        %s204 = scalar_lea.sflag [#allocation4], %s203
        %s205 = sand.u32 %s112, 1
        %s206 = smul.addr %s205, 8
        %s207 = scalar_lea.vmem [#allocation5], %s206
        %v208 = vld [vmem:[%s184] sm:$0x3]
        %v209 = vld [vmem:[%s184 + $0x2] sm:$0x3]
        %v210 = vld [vmem:[%s184 + $0x4] sm:$0x3]
        %v211 = vld [vmem:[%s184 + $0x6] sm:$0x3]
        %v216 = vperm.slane %v208, 0
        %v217 = vperm.slane %v208, 1
        %v218 = vperm.slane %v209, 0
        %v219 = vperm.slane %v209, 1
        %v220 = vperm.slane %v210, 0
        %v221 = vperm.slane %v210, 1
        %v222 = vperm.slane %v211, 0
        %v223 = vperm.slane %v211, 1
        %vm232 = vcmask 1040384
        %v233 = vsel %vm232, %v216, 0.0
        %v234 = vsel %vm232, %v218, 0.0
        %v235 = vadd.f32 %v233, %v234
        %v236 = vsel %vm232, %v220, 0.0
        %v237 = vadd.f32 %v235, %v236
        %v238 = vsel %vm232, %v222, 0.0
        %v239 = vadd.f32 %v237, %v238
        %v240 = vsel %vm232, %v217, 0.0
        %v241 = vsel %vm232, %v219, 0.0
        %v242 = vadd.f32 %v240, %v241
        %v243 = vsel %vm232, %v221, 0.0
        %v244 = vadd.f32 %v242, %v243
        %v245 = vsel %vm232, %v223, 0.0
        %v246 = vadd.f32 %v244, %v245
        %v247 = vmul.f32 %v208, %v208
        %v248 = vmul.f32 %v209, %v209
        %v249 = vmul.f32 %v210, %v210
        %v250 = vmul.f32 %v211, %v211
        %v255 = vperm.slane %v247, 0
        %v256 = vperm.slane %v247, 1
        %v257 = vperm.slane %v248, 0
        %v258 = vperm.slane %v248, 1
        %v259 = vperm.slane %v249, 0
        %v260 = vperm.slane %v249, 1
        %v261 = vperm.slane %v250, 0
        %v262 = vperm.slane %v250, 1
        %v271 = vsel %vm232, %v255, 0.0
        %v272 = vsel %vm232, %v257, 0.0
        %v273 = vadd.f32 %v271, %v272
        %v274 = vsel %vm232, %v259, 0.0
        %v275 = vadd.f32 %v273, %v274
        %v276 = vsel %vm232, %v261, 0.0
        %v277 = vadd.f32 %v275, %v276
        %v278 = vsel %vm232, %v256, 0.0
        %v279 = vsel %vm232, %v258, 0.0
        %v280 = vadd.f32 %v278, %v279
        %v281 = vsel %vm232, %v260, 0.0
        %v282 = vadd.f32 %v280, %v281
        %v283 = vsel %vm232, %v262, 0.0
        %v284 = vadd.f32 %v282, %v283
        %v285 = vmul.f32 %v239, 0.25
        %v286 = vmul.f32 %v246, 0.25
        %v287 = vmul.f32 %v277, 0.25
        %v288 = vmul.f32 %v284, 0.25
        %v289 = vmul.f32 %v285, %v285
        %v290 = vmul.f32 %v286, %v286
        %v291 = vsub.f32 %v287, %v289
        %v292 = vsub.f32 %v288, %v290
        %v293 = vmax.f32 %v291, 0.0
        %v294 = vmax.f32 %v292, 0.0
        %v295 = vadd.f32 %v293, 1e-05
        %v296 = vadd.f32 %v294, 1e-05
        %v297 = vrsqrt.pop %v295
        %v298 = vmul.f32 %v297, %v295
        %v299 = vmul.f32 %v298, %v297
        %v300 = vmul.f32 0.5, %v299
        %v301 = vsub.f32 1.5, %v300
        %v302 = vmul.f32 %v297, %v301
        %vm303 = vweird.f32 %v295
        %vm304 = vweird.f32 %v297
        %vm305 = vmor %vm303, %vm304
        %v306 = vsel %vm305, %v297, %v302
        %v307 = vrsqrt.pop %v296
        %v308 = vmul.f32 %v307, %v296
        %v309 = vmul.f32 %v308, %v307
        %v310 = vmul.f32 0.5, %v309
        %v311 = vsub.f32 1.5, %v310
        %v312 = vmul.f32 %v307, %v311
        %vm313 = vweird.f32 %v296
        %vm314 = vweird.f32 %v307
        %vm315 = vmor %vm313, %vm314
        %v316 = vsel %vm315, %v307, %v312
        %v317 = vld [vmem:[%s1] sm:$0x1]
        %v318 = vld [vmem:[%s1 + $0x1] sm:$0x1]
        %v319 = vld [vmem:[%s1 + $0x2] sm:$0x1]
        %v320 = vld [vmem:[%s1 + $0x3] sm:$0x1]
        %v321 = vld [vmem:[%s2] sm:$0x1]
        %v322 = vld [vmem:[%s2 + $0x1] sm:$0x1]
        %v323 = vld [vmem:[%s2 + $0x2] sm:$0x1]
        %v324 = vld [vmem:[%s2 + $0x3] sm:$0x1]
        %v327 = vrot.slane %v286, 7
        %v328 = vsel %vm232, %v285, %v327
        %v330 = vsub.f32 %v208, %v328
        %v331 = vsub.f32 %v209, %v328
        %v332 = vsub.f32 %v210, %v328
        %v333 = vsub.f32 %v211, %v328
        %v336 = vrot.slane %v316, 7
        %v337 = vsel %vm232, %v306, %v336
        %v339 = vmul.f32 %v330, %v337
        %v340 = vmul.f32 %v331, %v337
        %v341 = vmul.f32 %v332, %v337
        %v342 = vmul.f32 %v333, %v337
        %344 = vset.pattern.permute.xlu0 0
        %345 = vperm.xlu0 %344, %v317
        %v346 = vpop.permute.xlu0 %345
        %v348 = vperm.slane %v346, 0
        %350 = vset.pattern.permute.xlu0 0
        %351 = vperm.xlu0 %350, %v318
        %v352 = vpop.permute.xlu0 %351
        %v354 = vperm.slane %v352, 0
        %356 = vset.pattern.permute.xlu0 0
        %357 = vperm.xlu0 %356, %v319
        %v358 = vpop.permute.xlu0 %357
        %v360 = vperm.slane %v358, 0
        %362 = vset.pattern.permute.xlu0 0
        %363 = vperm.xlu0 %362, %v320
        %v364 = vpop.permute.xlu0 %363
        %v366 = vperm.slane %v364, 0
        %v367 = vmul.f32 %v339, %v348
        %v368 = vmul.f32 %v340, %v354
        %v369 = vmul.f32 %v341, %v360
        %v370 = vmul.f32 %v342, %v366
        %372 = vset.pattern.permute.xlu0 0
        %373 = vperm.xlu0 %372, %v321
        %v374 = vpop.permute.xlu0 %373
        %v376 = vperm.slane %v374, 0
        %378 = vset.pattern.permute.xlu0 0
        %379 = vperm.xlu0 %378, %v322
        %v380 = vpop.permute.xlu0 %379
        %v382 = vperm.slane %v380, 0
        %384 = vset.pattern.permute.xlu0 0
        %385 = vperm.xlu0 %384, %v323
        %v386 = vpop.permute.xlu0 %385
        %v388 = vperm.slane %v386, 0
        %390 = vset.pattern.permute.xlu0 0
        %391 = vperm.xlu0 %390, %v324
        %v392 = vpop.permute.xlu0 %391
        %v394 = vperm.slane %v392, 0
        %v395 = vadd.f32 %v367, %v376
        %v396 = vadd.f32 %v368, %v382
        %v397 = vadd.f32 %v369, %v388
        %v398 = vadd.f32 %v370, %v394
        %v399 = vlaneseq
        %vm400 = vcmp.ge.s32.totalorder %v399, 0
        %vm401 = vcmp.lt.s32.totalorder %v399, 256
        %vm402 = vmand %vm400, %vm401
        %403 = vst.msk [vmem:[%s207] sm:$0x3] %vm402, %v395
        %404 = vst.msk [vmem:[%s207 + $0x2] sm:$0x3] %vm402, %v396
        %405 = vst.msk [vmem:[%s207 + $0x4] sm:$0x3] %vm402, %v397
        %406 = vst.msk [vmem:[%s207 + $0x6] sm:$0x3] %vm402, %v398
        %s407 = sand.u32 %s112, 1
        %s408 = scalar_lea.sflag [#allocation4], %s407
        %s409 = sand.u32 %s112, 1
        %s410 = smul.addr %s409, 8
        %s411 = scalar_lea.vmem [#allocation5], %s410
        // Predicated region
        $region37: #{tpu_custom_call.1} parent=31 // pred_check
          %p412 = pneg %p122
        $region38: #{tpu_custom_call.1} parent=31 // pred_check_branch
          %414 = sbr.rel (%p412) target = $region40
        $region39: #{tpu_custom_call.1} parent=31 // pred_region
          %416 = vsyncadd %s408, 0
          %s417 = smul.addr %s25, 2
          %s418 = smul.addr %s24, 8
          %s419 = sadd.s32 %s417, %s418
          %s420 = scalar_lea.hbm %s3, %s419
          %s421 = sshll.u32 %s411, 4
          %s422 = int_to_ptr.vmem [resolvable:$true] %s421
          %s423 = sshll.u32 %s420, 4
          %s424 = int_to_ptr.hbm [resolvable:$true] %s423
          %429 = dma.vmem_to_hbm [thread:$0]  %s422, 128, %s424, %s408, 32, 32, 2
        $region40: #{tpu_custom_call.1} parent=31 // pred_fallthru
          _
      $region32: #{tpu_custom_call.1} parent=5 // pred_fallthru
        _
      %p430 = scmp.le.s32.totalorder 2, %s15
      // Predicated region
      $region41: #{tpu_custom_call.1} parent=5 // pred_check
        %p431 = pneg %p430
      $region42: #{tpu_custom_call.1} parent=5 // pred_check_branch
        %433 = sbr.rel (%p431) target = $region44
      $region43: #{tpu_custom_call.1} parent=5 // pred_region
        %s434 = ssub.s32 %s15, 2
        // Predicated region
        $region45: #{tpu_custom_call.1} parent=43 // pred_check
          %p435 = pneg %p128
        $region46: #{tpu_custom_call.1} parent=43 // pred_check_branch
          %437 = sbr.rel (%p435) target = $region48
        $region47: #{tpu_custom_call.1} parent=43 // pred_region
          %s438 = sand.u32 %s113, 1
          %s439 = scalar_lea.sflag [#allocation4], %s438
          %s440 = sand.u32 %s113, 1
          %s441 = smul.addr %s440, 8
          %s442 = scalar_lea.vmem [#allocation5], %s441
          %444 = dma.done %s439, 128
        $region48: #{tpu_custom_call.1} parent=43 // pred_fallthru
          _
      $region44: #{tpu_custom_call.1} parent=5 // pred_fallthru
        _
    $region6: #{tpu_custom_call.1} parent=1 // loop_footer
      %s19 = sadd.s32 1, %s15
    $region7: #{tpu_custom_call.1} parent=1 // loop_footer_branch
      %14 = sbr.rel target = $region3
    $region8: #{tpu_custom_call.1} parent=1 // loop_exit
      _
    %445 = vsyncpa [#allocation3], 1
    %s446 = scalar_lea.sflag [#allocation3], 1
    %447 = vsyncpa %s446, 1
    %448 = vsyncpa [#allocation4], 1
    %s449 = scalar_lea.sflag [#allocation4], 1
    %450 = vsyncpa %s449, 1

</llo_original>
